<compile_context>
chip_gen: v7x
topology: tpu7x:2x2x1
jax: 0.10.0
libtpu: 0.0.40
codegen_flags: <defaults>
</compile_context>

<pallas_src>
import functools

import jax
import jax.numpy as jnp
from jax.experimental import pallas as pl
from jax.experimental.pallas import tpu as pltpu

# SPLC hyperparameters (match the PyTorch module defaults).
TAU = 0.6
CHANGE_EPOCH = 1
MARGIN = 1.0
GAMMA = 2.0
REDUCTION = "sum"


def _round_up(x, m):
    return ((x + m - 1) // m) * m


def _splc_kernel(scalar_ref, logits_ref, targets_ref, out_ref):
    """One row tile: fused SPLC loss + per-block partial sum.

    scalar_ref (SMEM, int32[2]) = [epoch, num_valid_rows].
    """
    x = logits_ref[...].astype(jnp.float32)
    t = targets_ref[...].astype(jnp.float32)

    # logits = where(targets == 1, logits - margin, logits).  Exact compare
    # (not `x - margin*t`) so soft labels keep the reference semantics.
    x = jnp.where(t == 1.0, x - MARGIN, x)

    # Shared transcendentals: e = exp(-|x|) feeds both sigmoid(x) and the
    # numerically stable BCE-with-logits  softplus(x) - t*x
    #   = max(x, 0) - t*x + log(1 + e).
    e = jnp.exp(-jnp.abs(x))
    denom = 1.0 + e
    num = jnp.where(x >= 0.0, 1.0, e)                 # sigmoid(x) == num / denom
    pred = num * pl.reciprocal(denom, approx=True)    # EUP vrcp (own slot), ~1e-4 rel err

    # Self-paced correction.  The threshold test is done EXACTLY as
    # num > thresh * denom (denom > 0), so the approx reciprocal can never
    # flip the correction near tau.  Before change_epoch the threshold is an
    # unreachable sentinel (num <= 1 < 2*denom) -> no-op.
    thresh = jnp.where(scalar_ref[0] >= CHANGE_EPOCH, TAU, 2.0)
    t = jnp.where(num > thresh * denom, 1.0, t)

    # pt = (1-pred)*t + pred*(1-t) == pred + t - 2*pred*t (exact algebra).
    pt = pred + t - 2.0 * (pred * t)
    focal = pt * pt if GAMMA == 2.0 else pt ** GAMMA  # gamma==2 statically -> one mul

    bce = jnp.maximum(x, 0.0) - t * x + jnp.log(denom)
    loss = bce * focal

    # Ragged-tail mask: rows >= N (only in the last grid block, where the
    # BlockSpec window runs past the array) contribute exactly 0.  The select
    # also scrubs any NaN/Inf coming from the undefined out-of-bounds data.
    tm = logits_ref.shape[0]
    row_ids = (jax.lax.broadcasted_iota(jnp.int32, loss.shape, 0)
               + pl.program_id(0) * tm)
    loss = jnp.where(row_ids < scalar_ref[1], loss, 0.0)

    # Per-block partial sum; blocks are independent (grid axis is 'parallel'),
    # the wrapper adds them up.
    out_ref[...] = jnp.reshape(jnp.sum(loss), (1, 1, 1))


@functools.partial(jax.jit, static_argnames=("block_bytes",))
def splc_loss(logits, targets, epoch, *, block_bytes=6 * 1024 * 1024):
    """SPLC loss (reduction='sum').

    logits/targets: [N, C] (any dtype; math is f32 in-kernel — feed bf16/int8
    straight from the producer to cut HBM traffic).  epoch: int scalar.
    block_bytes: target combined bytes of ONE grid step's input blocks (both
    arrays, single buffer).  The double-buffered footprint is 2*block_bytes,
    kept ~12 MiB by default so it fits v5e's 16 MiB scoped-VMEM default and
    v7x's 32 MiB scoped / 64 MiB physical VMEM with headroom.
    """
    N, C = logits.shape
    assert targets.shape == (N, C)

    bytes_per_row = C * (logits.dtype.itemsize + targets.dtype.itemsize)

    # Dtype-aware row tile toward the 2-4 MB/input sweet spot, capped by the
    # batch, and clamped so there are >= 2 blocks whenever N allows (v7x
    # megacore; no-op elsewhere).
    tm = max(8, (block_bytes // max(bytes_per_row, 1)) // 8 * 8)
    tm = min(tm, _round_up(N, 8))
    tm = min(tm, max(8, _round_up(pl.cdiv(N, 2), 8)))
    # TODO(synk): for very large C (8 * bytes_per_row > block_bytes) add a
    # lane-aligned second grid axis over C instead of accepting oversized blocks.

    num_blocks = pl.cdiv(N, tm)

    # Scalars live in SMEM (scalar prefetch): [epoch, N] drive the self-paced
    # switch and the ragged-tail mask — no wrapper-side jnp.pad / HBM copy.
    scalars = jnp.stack([jnp.asarray(epoch, jnp.int32),
                         jnp.asarray(N, jnp.int32)])

    in_bytes = N * C * (logits.dtype.itemsize + targets.dtype.itemsize)
    # 2 buffers x (both input blocks) + headroom; clamp to safe per-gen bounds.
    vmem_limit = int(min(64 * 1024 * 1024,
                         max(16 * 1024 * 1024,
                             2 * tm * bytes_per_row + (2 << 20))))

    partials = pl.pallas_call(
        _splc_kernel,
        out_shape=jax.ShapeDtypeStruct((num_blocks, 1, 1), jnp.float32),
        grid_spec=pltpu.PrefetchScalarGridSpec(
            num_scalar_prefetch=1,
            grid=(num_blocks,),
            in_specs=[
                pl.BlockSpec((tm, C), lambda i, s: (i, 0)),
                pl.BlockSpec((tm, C), lambda i, s: (i, 0)),
            ],
            out_specs=pl.BlockSpec((1, 1, 1), lambda i, s: (i, 0, 0)),
        ),
        compiler_params=pltpu.CompilerParams(
            dimension_semantics=("parallel",),
            vmem_limit_bytes=vmem_limit),
        cost_estimate=pl.CostEstimate(
            flops=25 * N * C,
            transcendentals=3 * N * C,
            bytes_accessed=in_bytes + 4 * num_blocks),
    )(scalars, logits, targets)

    total = jnp.sum(partials)
    if REDUCTION == "sum":
        return total
    elif REDUCTION == "mean":
        return total / (N * C)
    else:
        # TODO(synk): reduction='none' would need the per-element loss as the
        # kernel output instead of per-block partial sums.
        raise NotImplementedError("reduction='none' not implemented")


def _splc_reference(logits, targets, epoch):
    """Pure-JAX reference mirroring the PyTorch forward (f32 math)."""
    logits = logits.astype(jnp.float32)
    targets = targets.astype(jnp.float32)
    logits = jnp.where(targets == 1, logits - MARGIN, logits)
    targets = jnp.where(
        jnp.logical_and(epoch >= CHANGE_EPOCH, jax.nn.sigmoid(logits) > TAU),
        1.0, targets)
    pred = jax.nn.sigmoid(logits)
    pt = (1 - pred) * targets + pred * (1 - targets)
    focal_weight = pt ** GAMMA
    los_pos = targets * jax.nn.log_sigmoid(logits)
    los_neg = (1 - targets) * jax.nn.log_sigmoid(-logits)
    loss = -(los_pos + los_neg) * focal_weight
    return loss.sum()


if __name__ == "__main__":
    key = jax.random.PRNGKey(0)
    k_logits, k_targets = jax.random.split(key)

    # Small [batch, num_classes] multi-label problem.
    N, C = 16, 128
    logits = jax.random.normal(k_logits, (N, C), dtype=jnp.float32) * 3.0
    targets = (jax.random.uniform(k_targets, (N, C)) > 0.7).astype(jnp.float32)

    # Both phases: before and after the self-paced correction kicks in.
    for epoch in (0, 2):
        out = jax.block_until_ready(splc_loss(logits, targets, epoch))
        ref = _splc_reference(logits, targets, epoch)
        assert jnp.allclose(out, ref, rtol=2e-3, atol=1e-2), (epoch, out, ref)

    # Batch not a multiple of the row tile -> exercises the in-kernel ragged-
    # tail mask (no jnp.pad anywhere in the pipeline).
    N2 = 20
    logits2 = jax.random.normal(k_logits, (N2, C), dtype=jnp.float32) * 3.0
    targets2 = (jax.random.uniform(k_targets, (N2, C)) > 0.7).astype(jnp.float32)
    out2 = jax.block_until_ready(splc_loss(logits2, targets2, 2))
    ref2 = _splc_reference(logits2, targets2, 2)
    assert jnp.allclose(out2, ref2, rtol=2e-3, atol=1e-2), (out2, ref2)

    # Multi-block parallel grid + narrow input dtypes (bf16 logits, int8 targets).
    N3 = 48
    logits3 = (jax.random.normal(k_logits, (N3, C), dtype=jnp.float32) * 3.0
               ).astype(jnp.bfloat16)
    targets3 = (jax.random.uniform(k_targets, (N3, C)) > 0.7).astype(jnp.int8)
    out3 = jax.block_until_ready(splc_loss(logits3, targets3, 1))
    ref3 = _splc_reference(logits3, targets3, 1)
    assert jnp.allclose(out3, ref3, rtol=2e-3, atol=1e-2), (out3, ref3)

    print("KERNEL_OK")
</pallas_src>

<mosaic_0001>
module attributes {stable_mosaic.version = 11 : i64} {
  func.func @_splc_kernel(%arg0: i32, %arg1: memref<2xi32, #tpu.memory_space<smem>>, %arg2: memref<8x128xf32, #tpu.memory_space<vmem>>, %arg3: memref<8x128xf32, #tpu.memory_space<vmem>>, %arg4: memref<1x1x1xf32, #tpu.memory_space<vmem>>) attributes {dimension_semantics = [#tpu.dimension_semantics<parallel>], iteration_bounds = array<i64: 2>, scalar_prefetch = 1 : i64, scratch_operands = 0 : i64, tpu.core_type = #tpu.core_type<tc>, window_params = [{transform_indices = @transform_0, window_bounds = array<i64: 8, 128>}, {transform_indices = @transform_1, window_bounds = array<i64: 8, 128>}, {transform_indices = @transform_2, window_bounds = array<i64: 1, 1, 1>}]} {
    %c0 = arith.constant 0 : index
    %c0_0 = arith.constant 0 : index
    %0 = vector.load %arg2[%c0, %c0_0] : memref<8x128xf32, #tpu.memory_space<vmem>>, vector<8x128xf32>
    %c0_1 = arith.constant 0 : index
    %c0_2 = arith.constant 0 : index
    %1 = vector.load %arg3[%c0_1, %c0_2] : memref<8x128xf32, #tpu.memory_space<vmem>>, vector<8x128xf32>
    %cst = arith.constant 1.000000e+00 : f32
    %2 = vector.broadcast %cst : f32 to vector<8x128xf32>
    %3 = arith.cmpf oeq, %1, %2 : vector<8x128xf32>
    %cst_3 = arith.constant 1.000000e+00 : f32
    %4 = vector.broadcast %cst_3 : f32 to vector<8x128xf32>
    %5 = arith.subf %0, %4 : vector<8x128xf32>
    %6 = arith.select %3, %5, %0 : vector<8x128xi1>, vector<8x128xf32>
    %7 = math.absf %6 : vector<8x128xf32>
    %cst_4 = arith.constant 0.000000e+00 : f32
    %8 = vector.broadcast %cst_4 : f32 to vector<8x128xf32>
    %9 = arith.subf %8, %7 : vector<8x128xf32>
    %10 = math.exp %9 : vector<8x128xf32>
    %cst_5 = arith.constant 1.000000e+00 : f32
    %11 = vector.broadcast %cst_5 : f32 to vector<8x128xf32>
    %12 = arith.addf %11, %10 : vector<8x128xf32>
    %cst_6 = arith.constant 0.000000e+00 : f32
    %13 = vector.broadcast %cst_6 : f32 to vector<8x128xf32>
    %14 = arith.cmpf oge, %6, %13 : vector<8x128xf32>
    %cst_7 = arith.constant 1.000000e+00 : f32
    %15 = vector.broadcast %cst_7 : f32 to vector<8x128xf32>
    %16 = arith.select %14, %15, %10 : vector<8x128xi1>, vector<8x128xf32>
    %17 = tpu.reciprocal %12 {approx = true} : vector<8x128xf32> -> vector<8x128xf32>
    %18 = arith.mulf %16, %17 : vector<8x128xf32>
    %c0_8 = arith.constant 0 : index
    %19 = memref.load %arg1[%c0_8] : memref<2xi32, #tpu.memory_space<smem>>
    %c1_i32 = arith.constant 1 : i32
    %20 = arith.cmpi sge, %19, %c1_i32 : i32
    %cst_9 = arith.constant 6.000000e-01 : f32
    %cst_10 = arith.constant 2.000000e+00 : f32
    %21 = arith.select %20, %cst_9, %cst_10 : f32
    %22 = vector.broadcast %21 : f32 to vector<8x128xf32>
    %23 = arith.mulf %22, %12 : vector<8x128xf32>
    %24 = arith.cmpf ogt, %16, %23 : vector<8x128xf32>
    %cst_11 = arith.constant 1.000000e+00 : f32
    %25 = vector.broadcast %cst_11 : f32 to vector<8x128xf32>
    %26 = arith.select %24, %25, %1 : vector<8x128xi1>, vector<8x128xf32>
    %27 = arith.addf %18, %26 : vector<8x128xf32>
    %28 = arith.mulf %18, %26 : vector<8x128xf32>
    %cst_12 = arith.constant 2.000000e+00 : f32
    %29 = vector.broadcast %cst_12 : f32 to vector<8x128xf32>
    %30 = arith.mulf %29, %28 : vector<8x128xf32>
    %31 = arith.subf %27, %30 : vector<8x128xf32>
    %32 = arith.mulf %31, %31 : vector<8x128xf32>
    %cst_13 = arith.constant 0.000000e+00 : f32
    %33 = vector.broadcast %cst_13 : f32 to vector<8x128xf32>
    %34 = arith.maximumf %6, %33 : vector<8x128xf32>
    %35 = arith.mulf %26, %6 : vector<8x128xf32>
    %36 = arith.subf %34, %35 : vector<8x128xf32>
    %37 = math.log %12 : vector<8x128xf32>
    %38 = arith.addf %36, %37 : vector<8x128xf32>
    %39 = arith.mulf %38, %32 : vector<8x128xf32>
    %40 = tpu.iota {dimensions = array<i32: 0>} : vector<8x128xi32>
    %c8_i32 = arith.constant 8 : i32
    %41 = arith.muli %arg0, %c8_i32 : i32
    %42 = vector.broadcast %41 : i32 to vector<8x128xi32>
    %43 = arith.addi %40, %42 : vector<8x128xi32>
    %c1 = arith.constant 1 : index
    %44 = memref.load %arg1[%c1] : memref<2xi32, #tpu.memory_space<smem>>
    %45 = vector.broadcast %44 : i32 to vector<8x128xi32>
    %46 = arith.cmpi slt, %43, %45 : vector<8x128xi32>
    %cst_14 = arith.constant 0.000000e+00 : f32
    %47 = vector.broadcast %cst_14 : f32 to vector<8x128xf32>
    %48 = arith.select %46, %39, %47 : vector<8x128xi1>, vector<8x128xf32>
    %49 = vector.shape_cast %48 : vector<8x128xf32> to vector<1x8x128xf32>
    %cst_15 = arith.constant dense<0.000000e+00> : vector<1xf32>
    %50 = vector.multi_reduction <add>, %49, %cst_15 [1, 2] : vector<1x8x128xf32> to vector<1xf32>
    %51 = vector.shape_cast %50 : vector<1xf32> to vector<1x1x1xf32>
    %52 = vector.extract %51[0, 0, 0] : f32 from vector<1x1x1xf32>
    %53 = vector.broadcast %52 : f32 to vector<1x1x1xf32>
    %c0_16 = arith.constant 0 : index
    %c0_17 = arith.constant 0 : index
    %c0_18 = arith.constant 0 : index
    %54 = vector.load %arg4[%c0_16, %c0_17, %c0_18] : memref<1x1x1xf32, #tpu.memory_space<vmem>>, vector<1x1x1xf32>
    tpu.vector_store %arg4[%c0_16, %c0_17, %c0_18], %53 {strides = array<i32>} : memref<1x1x1xf32, #tpu.memory_space<vmem>>, vector<1x1x1xf32>,
    return
  }
  func.func @transform_0(%arg0: i32, %arg1: memref<2xi32, #tpu.memory_space<smem>>) -> (i32, i32) {
    %c0_i32 = arith.constant 0 : i32
    %c0_i32_0 = arith.constant 0 : i32
    return %arg0, %c0_i32 : i32, i32
  }
  func.func @transform_1(%arg0: i32, %arg1: memref<2xi32, #tpu.memory_space<smem>>) -> (i32, i32) {
    %c0_i32 = arith.constant 0 : i32
    %c0_i32_0 = arith.constant 0 : i32
    return %arg0, %c0_i32 : i32, i32
  }
  func.func @transform_2(%arg0: i32, %arg1: memref<2xi32, #tpu.memory_space<smem>>) -> (i32, i32, i32) {
    %c0_i32 = arith.constant 0 : i32
    %c0_i32_0 = arith.constant 0 : i32
    %c0_i32_1 = arith.constant 0 : i32
    return %arg0, %c0_i32, %c0_i32_0 : i32, i32, i32
  }
}

</mosaic_0001>

<llo_original>
// kernel: splc_loss.1
$region0: #{splc_loss.1}
  #allocation0 [shape = 'u32[]', space=smem, size = 0x4, offset = 0x4, fixed_abs, tag = 'smem constant byte address 0x4 - core index']
  #allocation1 [shape = 'u32[144,128]{1,0:T(1,128)}', space=vmem, size = 0x12000, scoped, tag = 'internal scratch']
  #allocation2 [shape = 's32[1]{0}', space=sflag, size = 0x4, scoped, tag = 'scoped memory for splc_loss.1']
  #allocation3 [shape = 'u8[512]{0}', space=smem, size = 0x200, scoped, tag = 'prefetched SMEM operand 0']
  %s0 = inlined_call_operand.vmem [shape: s32[2], index: 0, kind: input, shape index: {}]
  %s1 = inlined_call_operand.hbm [shape: f32[16,128], index: 1, kind: input, shape index: {}]
  %s2 = inlined_call_operand.hbm [shape: f32[16,128], index: 2, kind: input, shape index: {}]
  %s3 = inlined_call_operand.vmem [shape: f32[2,1,1], index: 3, kind: output, shape index: {}]
  %s4 = sld [smem:[#allocation0]]
  $region49: #{splc_loss.1} parent=0
    _
  %s6 = ssub.s32 1, %s4
  %s7 = scalar_select 0, %s6, %s4
  %s8 = sshll.u32 %s0, 4
  %s9 = int_to_ptr.vmem [resolvable:$true] %s8
  %11 = dma.vmem_to_smem %s9, 16, [#allocation3], [#allocation2]
  %12 = dma.done [#allocation2], 16
  %13 = sfence
  $region1: #{splc_loss.1} parent=0
    #allocation4 [shape = 'u8[8192]{0}', space=vmem, size = 0x2000, scoped, tag = 'input window, operand 1']
    #allocation5 [shape = 's32[2]{0}', space=sflag, size = 0x8, scoped, tag = 'scoped memory for splc_loss.1']
    #allocation6 [shape = 'u8[8192]{0}', space=vmem, size = 0x2000, scoped, tag = 'input window, operand 2']
    #allocation7 [shape = 's32[2]{0}', space=sflag, size = 0x8, scoped, tag = 'scoped memory for splc_loss.1']
    %14 = vsyncpa [#allocation5], 0
    %s15 = scalar_lea.sflag [#allocation5], 1
    %16 = vsyncpa %s15, 0
    %17 = vsyncpa [#allocation7], 0
    %s18 = scalar_lea.sflag [#allocation7], 1
    %19 = vsyncpa %s18, 0
    loop: start=0, step=1, limit=4
    $region2: #{splc_loss.1} parent=1 // loop_pre_header
      _
    $region3: #{splc_loss.1} parent=1 // loop_header
      %s21 = sphi 0, %s25
      %p22 = scmp.ge.s32.totalorder %s21, 4
      %s31 = sphi 0, %s33
      %s34 = sphi 0, %s31
      %s35 = sphi 0, %s34
      %s51 = sphi 0, %s35
      %s57 = sphi 0, %s59
      %s60 = sphi 0, %s57
      %s61 = sphi 0, %s60
      %s77 = sphi 0, %s61
      %s83 = sphi 0, %s85
      %s86 = sphi 0, %s83
      %s87 = sphi 0, %s86
      %s103 = sphi 0, %s87
    $region4: #{splc_loss.1} parent=1 // loop_header_branch
      %24 = sbr.rel (%p22) target = $region8
    $region5: #{splc_loss.1} parent=1 // loop_body
      %s26 = ssub.s32 %s21, 1
      %s27 = ssub.s32 %s21, 2
      %s28 = sadd.s32 %s21, 1
      %s29 = ssub.s32 %s21, %s28
      %p30 = scmp.eq.s32.totalorder %s29, 0
      %s32 = sadd.s32 %s31, 1
      %s33 = scalar_select %p30, %s31, %s32
      %p36 = pneg %p30
      %p37 = scmp.eq.s32.totalorder %s21, 1
      %p38 = por %p36, %p37
      %p39 = scmp.ne.s32.totalorder %s31, %s34
      %p40 = scmp.eq.s32.totalorder %s21, 0
      %p41 = por %p39, %p40
      %p42 = scmp.ne.s32.totalorder %s31, %s34
      %p43 = scmp.eq.s32.totalorder %s26, 1
      %p44 = por %p42, %p43
      %p45 = scmp.ne.s32.totalorder %s34, %s35
      %p46 = scmp.eq.s32.totalorder %s26, 0
      %p47 = por %p45, %p46
      %p48 = scmp.ne.s32.totalorder %s34, %s35
      %p49 = scmp.eq.s32.totalorder %s27, 1
      %p50 = por %p48, %p49
      %p52 = scmp.ne.s32.totalorder %s35, %s51
      %p53 = scmp.eq.s32.totalorder %s27, 0
      %p54 = por %p52, %p53
      %s55 = ssub.s32 %s21, %s28
      %p56 = scmp.eq.s32.totalorder %s55, 0
      %s58 = sadd.s32 %s57, 1
      %s59 = scalar_select %p56, %s57, %s58
      %p62 = pneg %p56
      %p63 = scmp.eq.s32.totalorder %s21, 1
      %p64 = por %p62, %p63
      %p65 = scmp.ne.s32.totalorder %s57, %s60
      %p66 = scmp.eq.s32.totalorder %s21, 0
      %p67 = por %p65, %p66
      %p68 = scmp.ne.s32.totalorder %s57, %s60
      %p69 = scmp.eq.s32.totalorder %s26, 1
      %p70 = por %p68, %p69
      %p71 = scmp.ne.s32.totalorder %s60, %s61
      %p72 = scmp.eq.s32.totalorder %s26, 0
      %p73 = por %p71, %p72
      %p74 = scmp.ne.s32.totalorder %s60, %s61
      %p75 = scmp.eq.s32.totalorder %s27, 1
      %p76 = por %p74, %p75
      %p78 = scmp.ne.s32.totalorder %s61, %s77
      %p79 = scmp.eq.s32.totalorder %s27, 0
      %p80 = por %p78, %p79
      %s81 = ssub.s32 %s21, %s28
      %p82 = scmp.eq.s32.totalorder %s81, 0
      %s84 = sadd.s32 %s83, 1
      %s85 = scalar_select %p82, %s83, %s84
      %p88 = pneg %p82
      %p89 = scmp.eq.s32.totalorder %s21, 1
      %p90 = por %p88, %p89
      %p91 = scmp.ne.s32.totalorder %s83, %s86
      %p92 = scmp.eq.s32.totalorder %s21, 0
      %p93 = por %p91, %p92
      %p94 = scmp.ne.s32.totalorder %s83, %s86
      %p95 = scmp.eq.s32.totalorder %s26, 1
      %p96 = por %p94, %p95
      %p97 = scmp.ne.s32.totalorder %s86, %s87
      %p98 = scmp.eq.s32.totalorder %s26, 0
      %p99 = por %p97, %p98
      %p100 = scmp.ne.s32.totalorder %s86, %s87
      %p101 = scmp.eq.s32.totalorder %s27, 1
      %p102 = por %p100, %p101
      %p104 = scmp.ne.s32.totalorder %s87, %s103
      %p105 = scmp.eq.s32.totalorder %s27, 0
      %p106 = por %p104, %p105
      %p107 = scmp.le.s32.totalorder 1, %s21
      %p108 = scmp.lt.s32.totalorder %s21, 3
      %p109 = pnand %p107, %p108
      %p110 = pneg %p109
      // Predicated region
      $region9: #{splc_loss.1} parent=5 // pred_check
        _
      $region10: #{splc_loss.1} parent=5 // pred_check_branch
        %112 = sbr.rel (%p109) target = $region12
      $region11: #{splc_loss.1} parent=5 // pred_region
        %s113 = ssub.s32 %s21, 1
      $region12: #{splc_loss.1} parent=5 // pred_fallthru
        _
      %p114 = scmp.lt.s32.totalorder %s21, 2
      // Predicated region
      $region13: #{splc_loss.1} parent=5 // pred_check
        %p115 = pneg %p114
      $region14: #{splc_loss.1} parent=5 // pred_check_branch
        %117 = sbr.rel (%p115) target = $region16
      $region15: #{splc_loss.1} parent=5 // pred_region
        // Predicated region
        $region17: #{splc_loss.1} parent=15 // pred_check
          %p118 = pneg %p41
        $region18: #{splc_loss.1} parent=15 // pred_check_branch
          %120 = sbr.rel (%p118) target = $region20
        $region19: #{splc_loss.1} parent=15 // pred_region
          %s121 = sand.u32 %s31, 1
          %s122 = scalar_lea.sflag [#allocation5], %s121
          %s123 = sand.u32 %s31, 1
          %s124 = smul.addr %s123, 8
          %s125 = scalar_lea.vmem [#allocation4], %s124
          %s127 = ssub.s32 128, 128
          %128 = vsyncadd %s122, %s127
          %s129 = smul.addr %s21, 128
          %s130 = scalar_lea.hbm %s1, %s129
          %s132 = sshll.u32 %s125, 4
          %s133 = int_to_ptr.vmem [resolvable:$true] %s132
          %135 = dma.hbm_to_vmem [thread:$0]  %s130, 128, %s133, %s122
        $region20: #{splc_loss.1} parent=15 // pred_fallthru
          _
        // Predicated region
        $region21: #{splc_loss.1} parent=15 // pred_check
          %p136 = pneg %p67
        $region22: #{splc_loss.1} parent=15 // pred_check_branch
          %138 = sbr.rel (%p136) target = $region24
        $region23: #{splc_loss.1} parent=15 // pred_region
          %s139 = sand.u32 %s57, 1
          %s140 = scalar_lea.sflag [#allocation7], %s139
          %s141 = sand.u32 %s57, 1
          %s142 = smul.addr %s141, 8
          %s143 = scalar_lea.vmem [#allocation6], %s142
          %s145 = ssub.s32 128, 128
          %146 = vsyncadd %s140, %s145
          %s147 = smul.addr %s21, 128
          %s148 = scalar_lea.hbm %s2, %s147
          %s150 = sshll.u32 %s143, 4
          %s151 = int_to_ptr.vmem [resolvable:$true] %s150
          %153 = dma.hbm_to_vmem [thread:$0]  %s148, 128, %s151, %s140
        $region24: #{splc_loss.1} parent=15 // pred_fallthru
          _
      $region16: #{splc_loss.1} parent=5 // pred_fallthru
        _
      %p154 = scmp.le.s32.totalorder 1, %s21
      %p155 = scmp.lt.s32.totalorder %s21, 3
      %p156 = pnand %p154, %p155
      %p157 = pneg %p156
      // Predicated region
      $region25: #{splc_loss.1} parent=5 // pred_check
        _
      $region26: #{splc_loss.1} parent=5 // pred_check_branch
        %159 = sbr.rel (%p156) target = $region28
      $region27: #{splc_loss.1} parent=5 // pred_region
        %s160 = ssub.s32 %s21, 1
        %s161 = sand.u32 %s34, 1
        %s162 = scalar_lea.sflag [#allocation5], %s161
        %s163 = sand.u32 %s34, 1
        %s164 = smul.addr %s163, 8
        %s165 = scalar_lea.vmem [#allocation4], %s164
        // Predicated region
        $region29: #{splc_loss.1} parent=27 // pred_check
          %p166 = pneg %p47
        $region30: #{splc_loss.1} parent=27 // pred_check_branch
          %168 = sbr.rel (%p166) target = $region32
        $region31: #{splc_loss.1} parent=27 // pred_region
          %169 = dma.done %s162, 128
        $region32: #{splc_loss.1} parent=27 // pred_fallthru
          _
        %s170 = sand.u32 %s60, 1
        %s171 = scalar_lea.sflag [#allocation7], %s170
        %s172 = sand.u32 %s60, 1
        %s173 = smul.addr %s172, 8
        %s174 = scalar_lea.vmem [#allocation6], %s173
        // Predicated region
        $region33: #{splc_loss.1} parent=27 // pred_check
          %p175 = pneg %p73
        $region34: #{splc_loss.1} parent=27 // pred_check_branch
          %177 = sbr.rel (%p175) target = $region36
        $region35: #{splc_loss.1} parent=27 // pred_region
          %178 = dma.done %s171, 128
        $region36: #{splc_loss.1} parent=27 // pred_fallthru
          _
        %s179 = sand.u32 %s34, 1
        %s180 = scalar_lea.sflag [#allocation5], %s179
        %s181 = sand.u32 %s34, 1
        %s182 = smul.addr %s181, 8
        %s183 = scalar_lea.vmem [#allocation4], %s182
        %p184 = pneg %p47
        %p185 = pneg %p44
        %s186 = sand.u32 %s60, 1
        %s187 = scalar_lea.sflag [#allocation7], %s186
        %s188 = sand.u32 %s60, 1
        %s189 = smul.addr %s188, 8
        %s190 = scalar_lea.vmem [#allocation6], %s189
        %p191 = pneg %p73
        %p192 = pneg %p70
        %p193 = pneg %p99
        %p194 = pneg %p96
        %p195 = scmp.lt.s32.totalorder %s26, 1
        %s196 = scalar_select %p195, %s26, 1
        %s197 = scalar_lea.vmem %s3, %s196
        %p198 = scmp.lt.s32.totalorder %s26, 1
        %s199 = scalar_select %p198, %s26, 1
        %s200 = scalar_lea.vmem %s3, %s199
        %v201 = vld [vmem:[%s165] sm:$0xff]
        %v202 = vld [vmem:[%s174] sm:$0xff]
        %vm203 = vcmp.eq.f32.partialorder %v202, 1.0
        %v204 = vsub.f32 %v201, 1.0
        %v205 = vsel %vm203, %v204, %v201
        %v206 = vand.u32 2147483647, %v205
        %v207 = vsub.f32 0.0, %v206
        %v208 = vmul.f32 %v207, 1.442695
        %v209 = vpow.pop %v208
        %v210 = vadd.f32 %v209, 1.0
        %vm211 = vcmp.ge.f32.partialorder %v205, 0.0
        %v212 = vsel %vm211, 1.0, %v209
        %v213 = vrcp.pop %v210
        %v214 = vmul.f32 %v212, %v213
        %s215 = sld [smem:[#allocation3]]
        %p216 = scmp.ge.s32.totalorder %s215, 1
        %s217 = scalar_select %p216, 0.6, 2.0
        %v218 = vstv %s217
        %v219 = vmul.f32 %v218, %v210
        %vm220 = vcmp.gt.f32.partialorder %v212, %v219
        %v221 = vsel %vm220, 1.0, %v202
        %v222 = vadd.f32 %v214, %v221
        %v223 = vmul.f32 %v214, %v221
        %v224 = vmul.f32 %v223, 2.0
        %v225 = vsub.f32 %v222, %v224
        %v226 = vmul.f32 %v225, %v225
        %v227 = vmax.f32 %v205, 0.0
        %v228 = vmul.f32 %v221, %v205
        %v229 = vsub.f32 %v227, %v228
        %v230 = vlog2.pop %v210
        %v231 = vmul.f32 %v230, 0.6931472
        %v232 = vadd.f32 %v229, %v231
        %v233 = vmul.f32 %v232, %v226
        %v234 = vlaneseq
        %v235 = vshrl.u32 %v234, 7
        %s236 = smul.u32 %s26, 8
        %v237 = vstv %s236
        %v238 = vadd.s32 %v235, %v237
        %s239 = sld [smem:[#allocation3 + $0x1]]
        %v240 = vstv %s239
        %vm241 = vcmp.lt.s32.totalorder %v238, %v240
        %v242 = vsel %vm241, %v233, 0.0
        %243 = vadd.xlane.f32.xlu0 %v242
        %v244 = vpop.xlane.xlu0 %243
        %v245 = vrot.slane %v244, 4
        %v246 = vadd.f32 %v244, %v245
        %v247 = vrot.slane %v246, 2
        %v248 = vadd.f32 %v246, %v247
        %v249 = vrot.slane %v248, 1
        %v250 = vadd.f32 %v248, %v249
        %s251 = vtos %v250
        %v252 = vstv %s251
        %vm253 = vcmask 0
        %254 = vst.msk [vmem:[%s200] sm:$0x1] %vm253, %v252
        %p255 = scmp.lt.s32.totalorder %s26, 1
        %s256 = scalar_select %p255, %s26, 1
        %s257 = scalar_lea.vmem %s3, %s256
        // Predicated region
        $region37: #{splc_loss.1} parent=27 // pred_check
          %p258 = pneg %p96
        $region38: #{splc_loss.1} parent=27 // pred_check_branch
          %260 = sbr.rel (%p258) target = $region40
        $region39: #{splc_loss.1} parent=27 // pred_region
          _
        $region40: #{splc_loss.1} parent=27 // pred_fallthru
          _
      $region28: #{splc_loss.1} parent=5 // pred_fallthru
        _
      %p261 = scmp.le.s32.totalorder 2, %s21
      // Predicated region
      $region41: #{splc_loss.1} parent=5 // pred_check
        %p262 = pneg %p261
      $region42: #{splc_loss.1} parent=5 // pred_check_branch
        %264 = sbr.rel (%p262) target = $region44
      $region43: #{splc_loss.1} parent=5 // pred_region
        %s265 = ssub.s32 %s21, 2
        // Predicated region
        $region45: #{splc_loss.1} parent=43 // pred_check
          %p266 = pneg %p102
        $region46: #{splc_loss.1} parent=43 // pred_check_branch
          %268 = sbr.rel (%p266) target = $region48
        $region47: #{splc_loss.1} parent=43 // pred_region
          %p269 = scmp.lt.s32.totalorder %s27, 1
          %s270 = scalar_select %p269, %s27, 1
          %s271 = scalar_lea.vmem %s3, %s270
        $region48: #{splc_loss.1} parent=43 // pred_fallthru
          _
      $region44: #{splc_loss.1} parent=5 // pred_fallthru
        _
    $region6: #{splc_loss.1} parent=1 // loop_footer
      %s25 = sadd.s32 1, %s21
    $region7: #{splc_loss.1} parent=1 // loop_footer_branch
      %20 = sbr.rel target = $region3
    $region8: #{splc_loss.1} parent=1 // loop_exit
      _
    %272 = vsyncpa [#allocation5], 1
    %s273 = scalar_lea.sflag [#allocation5], 1
    %274 = vsyncpa %s273, 1
    %275 = vsyncpa [#allocation7], 1
    %s276 = scalar_lea.sflag [#allocation7], 1
    %277 = vsyncpa %s276, 1

</llo_original>
